<compile_context>
chip_gen: v5e
topology: v5e:2x2
jax: 0.10.0
libtpu: 0.0.40
codegen_flags: <defaults>
</compile_context>

<pallas_src>
import jax
import jax.numpy as jnp
from jax import lax
from jax.experimental import pallas as pl
from jax.experimental.pallas import tpu as pltpu


def _round_up(x, m):
    return (x + m - 1) // m * m


def _critic_kernel(s_ref, w1_ref, w2_ref, aux_ref, o_ref):
    # s_ref  : [TB, D]    f32  streamed tile of states (batch-major, as given)
    # w1_ref : [H, D]     f32  fc1.weight in PyTorch [out, in] layout (resident)
    # w2_ref : [H, H]     f32  fc2.weight (resident)
    # aux_ref: [H, 4]     f32  col0=fc1.bias, col1=fc2.bias, col2=fc3.weight,
    #                          aux[0,3]=fc3.bias (resident)
    # o_ref  : [1, 1, TB] f32  value estimates, batch in the lane dimension
    x = s_ref[...]                                   # [TB, D]
    b1 = aux_ref[:, 0:1]                             # [H, 1]
    b2 = aux_ref[:, 1:2]                             # [H, 1]
    w3 = aux_ref[:, 2:3]                             # [H, 1]  (fc3 weight column)
    b3 = aux_ref[0:1, 3:4]                           # [1, 1]

    # Feature-major fc1: W1 [H, D] (x) s [TB, D] contracted on D (NT matmul on
    # the MXU, no explicit transpose of x needed) -> [H, TB], batch in lanes.
    h1 = jnp.tanh(
        lax.dot_general(w1_ref[...], x, (((1,), (1,)), ((), ())),
                        preferred_element_type=jnp.float32) + b1)        # [H, TB]
    h2 = jnp.tanh(
        jnp.dot(w2_ref[...], h1, preferred_element_type=jnp.float32) + b2)  # [H, TB]

    # fc3 (out_features == 1): VPU elementwise multiply + cross-sublane (XLU)
    # reduce over the H features; keeps the batch lane-dense all the way out.
    v = jnp.sum(h2 * w3, axis=0, keepdims=True) + b3                     # [1, TB]
    o_ref[...] = v.reshape(o_ref.shape)


def critic_forward(s, w1, w2, aux, *, tb=512):
    """Critic value head: v = fc3(tanh(fc2(tanh(fc1(s))))).

    s   : [B, state_dim] f32 (streamed; no wrapper cast/pad/transpose pass)
    w1  : [hidden, state_dim] f32 (PyTorch fc1.weight layout)
    w2  : [hidden, hidden]    f32 (PyTorch fc2.weight layout)
    aux : [hidden, 4]         f32 (b1 | b2 | fc3.weight | fc3.bias-at-[0,3])
    returns [B, 1] f32
    """
    B, D = s.shape
    H = w1.shape[0]

    # Tile the batch.  Large tiles amortize the ~0.35us per-grid-step overhead;
    # for batches >= 256 ensure at least 2 grid steps so the "parallel" axis can
    # be sharded across v7x's two TensorCores.  Per-step VMEM stays << 1 MiB.
    TB = min(tb, _round_up(B, 8))
    if B >= 256 and B <= TB:
        TB = _round_up(-(-B // 2), 8)
    n_tiles = -(-B // TB)  # cdiv; tail block (if any) is partial / masked.
    # Note: garbage rows in a partial tail block only ever produce garbage in
    # their own output lanes (all ops are per-lane in batch), and those lanes
    # are sliced off below — no NaN propagation into the valid rows.

    out = pl.pallas_call(
        _critic_kernel,
        out_shape=jax.ShapeDtypeStruct((n_tiles, 1, TB), jnp.float32),
        grid=(n_tiles,),
        in_specs=[
            pl.BlockSpec((TB, D), lambda i: (i, 0)),   # s: streamed & double-buffered
            pl.BlockSpec((H, D), lambda i: (0, 0)),    # weights: resident, DMA'd once
            pl.BlockSpec((H, H), lambda i: (0, 0)),
            pl.BlockSpec((H, 4), lambda i: (0, 0)),
        ],
        out_specs=pl.BlockSpec((1, 1, TB), lambda i: (i, 0, 0)),  # lane-dense store
        compiler_params=pltpu.CompilerParams(
            dimension_semantics=("parallel",),         # megacore sharding on v7x
        ),
    )(s, w1, w2, aux)

    # (n_tiles, 1, TB) -> flat -> first B rows -> [B, 1]; contiguous, no extra pass.
    return out.reshape(n_tiles * TB)[:B].reshape(B, 1)


def orthogonal(key, shape, gain=1.0):
    """Orthogonal init following nn.init.orthogonal_ semantics (not bit-identical)."""
    rows, cols = shape
    fr, fc = (rows, cols) if rows >= cols else (cols, rows)
    a = jax.random.normal(key, (fr, fc), dtype=jnp.float32)
    q, r = jnp.linalg.qr(a)
    q = q * jnp.sign(jnp.diagonal(r))[None, :]   # sign correction, as torch does
    if rows < cols:
        q = q.T
    return gain * q


def make_critic_params(key, state_dim, hidden_width):
    k1, k2, k3 = jax.random.split(key, 3)
    w1 = orthogonal(k1, (hidden_width, state_dim))        # fc1.weight [out, in]
    w2 = orthogonal(k2, (hidden_width, hidden_width))     # fc2.weight
    w3 = orthogonal(k3, (1, hidden_width))                # fc3.weight [1, hidden]
    aux = jnp.zeros((hidden_width, 4), jnp.float32)
    aux = aux.at[:, 2].set(w3[0])                         # fc3 weight column
    # cols 0/1 (fc1/fc2 bias) and aux[0, 3] (fc3 bias) stay 0, per orthogonal_init().
    return w1, w2, aux


def critic_reference(s, w1, w2, aux):
    """Pure-JAX f32 reference with PyTorch forward semantics."""
    b1, b2, w3, b3 = aux[:, 0], aux[:, 1], aux[:, 2], aux[0, 3]
    h1 = jnp.tanh(s @ w1.T + b1[None, :])
    h2 = jnp.tanh(h1 @ w2.T + b2[None, :])
    return h2 @ w3[:, None] + b3


if __name__ == "__main__":
    # Small shapes consistent with the module: batch=64, state_dim=16, hidden=32.
    B, state_dim, hidden_width = 64, 16, 32

    key = jax.random.PRNGKey(0)
    k_s, k_p = jax.random.split(key)
    s = jax.random.normal(k_s, (B, state_dim), dtype=jnp.float32)
    w1, w2, aux = make_critic_params(k_p, state_dim, hidden_width)

    # Small tile (tb=16 -> 4 grid steps) exercises pipelining + resident weights.
    v = jax.block_until_ready(critic_forward(s, w1, w2, aux, tb=16))
    assert v.shape == (B, 1)

    v_ref = critic_reference(s, w1, w2, aux)
    err = float(jnp.max(jnp.abs(v - v_ref)))
    assert jnp.allclose(v, v_ref, atol=1e-4, rtol=1e-4), err

    # Single-tile path (default tb >= B).
    v_one = jax.block_until_ready(critic_forward(s, w1, w2, aux))
    assert jnp.allclose(v_one, v_ref, atol=1e-4, rtol=1e-4)

    # Ragged batch (not a multiple of the tile) exercises the masked tail block.
    v_rag = jax.block_until_ready(critic_forward(s[:10], w1, w2, aux, tb=8))
    assert v_rag.shape == (10, 1)
    assert jnp.allclose(v_rag, v_ref[:10], atol=1e-4, rtol=1e-4)

    print("KERNEL_OK")
</pallas_src>

<mosaic_0001>
module attributes {stable_mosaic.version = 11 : i64} {
  func.func @_critic_kernel(%arg0: i32, %arg1: memref<16x16xf32, #tpu.memory_space<vmem>>, %arg2: memref<32x16xf32, #tpu.memory_space<vmem>>, %arg3: memref<32x32xf32, #tpu.memory_space<vmem>>, %arg4: memref<32x4xf32, #tpu.memory_space<vmem>>, %arg5: memref<1x1x16xf32, #tpu.memory_space<vmem>>) attributes {dimension_semantics = [#tpu.dimension_semantics<parallel>], iteration_bounds = array<i64: 4>, scalar_prefetch = 0 : i64, scratch_operands = 0 : i64, tpu.core_type = #tpu.core_type<tc>, window_params = [{transform_indices = @transform_0, window_bounds = array<i64: 16, 16>}, {pipeline_mode = #tpu.pipeline_mode<synchronous>, transform_indices = @transform_1, window_bounds = array<i64: 32, 16>}, {pipeline_mode = #tpu.pipeline_mode<synchronous>, transform_indices = @transform_2, window_bounds = array<i64: 32, 32>}, {pipeline_mode = #tpu.pipeline_mode<synchronous>, transform_indices = @transform_3, window_bounds = array<i64: 32, 4>}, {transform_indices = @transform_4, window_bounds = array<i64: 1, 1, 16>}]} {
    %c0 = arith.constant 0 : index
    %c0_0 = arith.constant 0 : index
    %0 = vector.load %arg1[%c0, %c0_0] : memref<16x16xf32, #tpu.memory_space<vmem>>, vector<16x16xf32>
    %c0_1 = arith.constant 0 : index
    %c0_2 = arith.constant 0 : index
    %1 = vector.load %arg4[%c0_1, %c0_2] : memref<32x4xf32, #tpu.memory_space<vmem>>, vector<32x1xf32>
    %c0_3 = arith.constant 0 : index
    %c1 = arith.constant 1 : index
    %2 = vector.load %arg4[%c0_3, %c1] : memref<32x4xf32, #tpu.memory_space<vmem>>, vector<32x1xf32>
    %c0_4 = arith.constant 0 : index
    %c2 = arith.constant 2 : index
    %3 = vector.load %arg4[%c0_4, %c2] : memref<32x4xf32, #tpu.memory_space<vmem>>, vector<32x1xf32>
    %c0_5 = arith.constant 0 : index
    %c3 = arith.constant 3 : index
    %4 = vector.load %arg4[%c0_5, %c3] : memref<32x4xf32, #tpu.memory_space<vmem>>, vector<1x1xf32>
    %c0_6 = arith.constant 0 : index
    %c0_7 = arith.constant 0 : index
    %5 = vector.load %arg2[%c0_6, %c0_7] : memref<32x16xf32, #tpu.memory_space<vmem>>, vector<32x16xf32>
    %cst = arith.constant dense<0.000000e+00> : vector<32x16xf32>
    %6 = tpu.matmul %5, %0, %cst {dimension_numbers = #tpu.dot_dimension_numbers<[1], [1], [0], [0], [0, 0, 1, 0], [], []>} : vector<32x16xf32>, vector<16x16xf32>, vector<32x16xf32> -> vector<32x16xf32>
    %7 = vector.broadcast %1 : vector<32x1xf32> to vector<32x16xf32>
    %8 = arith.addf %6, %7 : vector<32x16xf32>
    %9 = math.tanh %8 : vector<32x16xf32>
    %c0_8 = arith.constant 0 : index
    %c0_9 = arith.constant 0 : index
    %10 = vector.load %arg3[%c0_8, %c0_9] : memref<32x32xf32, #tpu.memory_space<vmem>>, vector<32x32xf32>
    %cst_10 = arith.constant dense<0.000000e+00> : vector<32x16xf32>
    %11 = tpu.matmul %10, %9, %cst_10 {dimension_numbers = #tpu.dot_dimension_numbers<[1], [0], [0], [1], [0, 0, 1, 1], [], []>} : vector<32x32xf32>, vector<32x16xf32>, vector<32x16xf32> -> vector<32x16xf32>
    %12 = vector.broadcast %2 : vector<32x1xf32> to vector<32x16xf32>
    %13 = arith.addf %11, %12 : vector<32x16xf32>
    %14 = math.tanh %13 : vector<32x16xf32>
    %15 = vector.broadcast %3 : vector<32x1xf32> to vector<32x16xf32>
    %16 = arith.mulf %14, %15 : vector<32x16xf32>
    %cst_11 = arith.constant dense<0.000000e+00> : vector<16xf32>
    %17 = vector.multi_reduction <add>, %16, %cst_11 [0] : vector<32x16xf32> to vector<16xf32>
    %18 = vector.shape_cast %17 : vector<16xf32> to vector<1x16xf32>
    %19 = vector.broadcast %4 : vector<1x1xf32> to vector<1x16xf32>
    %20 = arith.addf %18, %19 : vector<1x16xf32>
    %21 = vector.shape_cast %20 : vector<1x16xf32> to vector<1x1x16xf32>
    %c0_12 = arith.constant 0 : index
    %c0_13 = arith.constant 0 : index
    %c0_14 = arith.constant 0 : index
    %22 = vector.load %arg5[%c0_12, %c0_13, %c0_14] : memref<1x1x16xf32, #tpu.memory_space<vmem>>, vector<1x1x16xf32>
    tpu.vector_store %arg5[%c0_12, %c0_13, %c0_14], %21 {strides = array<i32>} : memref<1x1x16xf32, #tpu.memory_space<vmem>>, vector<1x1x16xf32>,
    return
  }
  func.func @transform_0(%arg0: i32) -> (i32, i32) {
    %c0_i32 = arith.constant 0 : i32
    %c0_i32_0 = arith.constant 0 : i32
    return %arg0, %c0_i32 : i32, i32
  }
  func.func @transform_1(%arg0: i32) -> (i32, i32) {
    %c0_i32 = arith.constant 0 : i32
    %c0_i32_0 = arith.constant 0 : i32
    %c0_i32_1 = arith.constant 0 : i32
    return %c0_i32, %c0_i32_0 : i32, i32
  }
  func.func @transform_2(%arg0: i32) -> (i32, i32) {
    %c0_i32 = arith.constant 0 : i32
    %c0_i32_0 = arith.constant 0 : i32
    %c0_i32_1 = arith.constant 0 : i32
    return %c0_i32, %c0_i32_0 : i32, i32
  }
  func.func @transform_3(%arg0: i32) -> (i32, i32) {
    %c0_i32 = arith.constant 0 : i32
    %c0_i32_0 = arith.constant 0 : i32
    %c0_i32_1 = arith.constant 0 : i32
    return %c0_i32, %c0_i32_0 : i32, i32
  }
  func.func @transform_4(%arg0: i32) -> (i32, i32, i32) {
    %c0_i32 = arith.constant 0 : i32
    %c0_i32_0 = arith.constant 0 : i32
    %c0_i32_1 = arith.constant 0 : i32
    return %arg0, %c0_i32, %c0_i32_0 : i32, i32, i32
  }
}

</mosaic_0001>

<llo_original>
// kernel: tpu_custom_call.1
$region0: #{tpu_custom_call.1}
  #allocation0 [shape = 'u32[]', space=smem, size = 0x4, offset = 0x4, fixed_abs, tag = 'smem constant byte address 0x4 - core index']
  #allocation1 [shape = 'u32[72,128]{1,0:T(1,128)}', space=vmem, size = 0x9000, scoped, tag = 'internal scratch']
  %s0 = inlined_call_operand.vmem [shape: f32[64,16], index: 0, kind: input, shape index: {}]
  %s1 = inlined_call_operand.vmem [shape: f32[32,16], index: 1, kind: input, shape index: {}]
  %s2 = inlined_call_operand.vmem [shape: f32[32,32], index: 2, kind: input, shape index: {}]
  %s3 = inlined_call_operand.vmem [shape: f32[32,4], index: 3, kind: input, shape index: {}]
  %s4 = inlined_call_operand.hbm [shape: f32[4,1,16], index: 4, kind: output, shape index: {}]
  %s5 = sld [smem:[#allocation0]]
  $region49: #{tpu_custom_call.1} parent=0
    _
  %s7 = ssub.s32 1, %s5
  %s8 = scalar_select 0, %s7, %s5
  $region1: #{tpu_custom_call.1} parent=0
    #allocation2 [shape = 'u8[1024]{0}', space=vmem, size = 0x400, scoped, tag = 'output window, operand 0']
    #allocation3 [shape = 's32[2]{0}', space=sflag, size = 0x8, scoped, tag = 'scoped memory for tpu_custom_call.1']
    %9 = vsyncpa [#allocation3], 0
    %s10 = scalar_lea.sflag [#allocation3], 1
    %11 = vsyncpa %s10, 0
    loop: start=0, step=1, limit=6
    $region2: #{tpu_custom_call.1} parent=1 // loop_pre_header
      _
    $region3: #{tpu_custom_call.1} parent=1 // loop_header
      %s13 = sphi 0, %s17
      %p14 = scmp.ge.s32.totalorder %s13, 6
      %s23 = sphi 0, %s25
      %s26 = sphi 0, %s23
      %s27 = sphi 0, %s26
      %s43 = sphi 0, %s27
      %s47 = sphi 0, %s47
      %s49 = sphi 0, %s47
      %s50 = sphi 0, %s49
      %s64 = sphi 0, %s50
      %s68 = sphi 0, %s68
      %s70 = sphi 0, %s68
      %s71 = sphi 0, %s70
      %s85 = sphi 0, %s71
      %s89 = sphi 0, %s89
      %s91 = sphi 0, %s89
      %s92 = sphi 0, %s91
      %s106 = sphi 0, %s92
      %s112 = sphi 0, %s114
      %s115 = sphi 0, %s112
      %s116 = sphi 0, %s115
      %s132 = sphi 0, %s116
    $region4: #{tpu_custom_call.1} parent=1 // loop_header_branch
      %16 = sbr.rel (%p14) target = $region8
    $region5: #{tpu_custom_call.1} parent=1 // loop_body
      %s18 = ssub.s32 %s13, 1
      %s19 = ssub.s32 %s13, 2
      %s20 = sadd.s32 %s13, 1
      %s21 = ssub.s32 %s13, %s20
      %p22 = scmp.eq.s32.totalorder %s21, 0
      %s24 = sadd.s32 %s23, 1
      %s25 = scalar_select %p22, %s23, %s24
      %p28 = pneg %p22
      %p29 = scmp.eq.s32.totalorder %s13, 3
      %p30 = por %p28, %p29
      %p31 = scmp.ne.s32.totalorder %s23, %s26
      %p32 = scmp.eq.s32.totalorder %s13, 0
      %p33 = por %p31, %p32
      %p34 = scmp.ne.s32.totalorder %s23, %s26
      %p35 = scmp.eq.s32.totalorder %s18, 3
      %p36 = por %p34, %p35
      %p37 = scmp.ne.s32.totalorder %s26, %s27
      %p38 = scmp.eq.s32.totalorder %s18, 0
      %p39 = por %p37, %p38
      %p40 = scmp.ne.s32.totalorder %s26, %s27
      %p41 = scmp.eq.s32.totalorder %s19, 3
      %p42 = por %p40, %p41
      %p44 = scmp.ne.s32.totalorder %s27, %s43
      %p45 = scmp.eq.s32.totalorder %s19, 0
      %p46 = por %p44, %p45
      %s48 = sadd.s32 %s47, 1
      %p51 = scmp.eq.s32.totalorder %s13, 3
      %p52 = scmp.ne.s32.totalorder %s47, %s49
      %p53 = scmp.eq.s32.totalorder %s13, 0
      %p54 = por %p52, %p53
      %p55 = scmp.ne.s32.totalorder %s47, %s49
      %p56 = scmp.eq.s32.totalorder %s18, 3
      %p57 = por %p55, %p56
      %p58 = scmp.ne.s32.totalorder %s49, %s50
      %p59 = scmp.eq.s32.totalorder %s18, 0
      %p60 = por %p58, %p59
      %p61 = scmp.ne.s32.totalorder %s49, %s50
      %p62 = scmp.eq.s32.totalorder %s19, 3
      %p63 = por %p61, %p62
      %p65 = scmp.ne.s32.totalorder %s50, %s64
      %p66 = scmp.eq.s32.totalorder %s19, 0
      %p67 = por %p65, %p66
      %s69 = sadd.s32 %s68, 1
      %p72 = scmp.eq.s32.totalorder %s13, 3
      %p73 = scmp.ne.s32.totalorder %s68, %s70
      %p74 = scmp.eq.s32.totalorder %s13, 0
      %p75 = por %p73, %p74
      %p76 = scmp.ne.s32.totalorder %s68, %s70
      %p77 = scmp.eq.s32.totalorder %s18, 3
      %p78 = por %p76, %p77
      %p79 = scmp.ne.s32.totalorder %s70, %s71
      %p80 = scmp.eq.s32.totalorder %s18, 0
      %p81 = por %p79, %p80
      %p82 = scmp.ne.s32.totalorder %s70, %s71
      %p83 = scmp.eq.s32.totalorder %s19, 3
      %p84 = por %p82, %p83
      %p86 = scmp.ne.s32.totalorder %s71, %s85
      %p87 = scmp.eq.s32.totalorder %s19, 0
      %p88 = por %p86, %p87
      %s90 = sadd.s32 %s89, 1
      %p93 = scmp.eq.s32.totalorder %s13, 3
      %p94 = scmp.ne.s32.totalorder %s89, %s91
      %p95 = scmp.eq.s32.totalorder %s13, 0
      %p96 = por %p94, %p95
      %p97 = scmp.ne.s32.totalorder %s89, %s91
      %p98 = scmp.eq.s32.totalorder %s18, 3
      %p99 = por %p97, %p98
      %p100 = scmp.ne.s32.totalorder %s91, %s92
      %p101 = scmp.eq.s32.totalorder %s18, 0
      %p102 = por %p100, %p101
      %p103 = scmp.ne.s32.totalorder %s91, %s92
      %p104 = scmp.eq.s32.totalorder %s19, 3
      %p105 = por %p103, %p104
      %p107 = scmp.ne.s32.totalorder %s92, %s106
      %p108 = scmp.eq.s32.totalorder %s19, 0
      %p109 = por %p107, %p108
      %s110 = ssub.s32 %s13, %s20
      %p111 = scmp.eq.s32.totalorder %s110, 0
      %s113 = sadd.s32 %s112, 1
      %s114 = scalar_select %p111, %s112, %s113
      %p117 = pneg %p111
      %p118 = scmp.eq.s32.totalorder %s13, 3
      %p119 = por %p117, %p118
      %p120 = scmp.ne.s32.totalorder %s112, %s115
      %p121 = scmp.eq.s32.totalorder %s13, 0
      %p122 = por %p120, %p121
      %p123 = scmp.ne.s32.totalorder %s112, %s115
      %p124 = scmp.eq.s32.totalorder %s18, 3
      %p125 = por %p123, %p124
      %p126 = scmp.ne.s32.totalorder %s115, %s116
      %p127 = scmp.eq.s32.totalorder %s18, 0
      %p128 = por %p126, %p127
      %p129 = scmp.ne.s32.totalorder %s115, %s116
      %p130 = scmp.eq.s32.totalorder %s19, 3
      %p131 = por %p129, %p130
      %p133 = scmp.ne.s32.totalorder %s116, %s132
      %p134 = scmp.eq.s32.totalorder %s19, 0
      %p135 = por %p133, %p134
      %p136 = scmp.le.s32.totalorder 1, %s13
      %p137 = scmp.lt.s32.totalorder %s13, 5
      %p138 = pnand %p136, %p137
      %p139 = pneg %p138
      // Predicated region
      $region9: #{tpu_custom_call.1} parent=5 // pred_check
        _
      $region10: #{tpu_custom_call.1} parent=5 // pred_check_branch
        %141 = sbr.rel (%p138) target = $region12
      $region11: #{tpu_custom_call.1} parent=5 // pred_region
        %s142 = ssub.s32 %s13, 1
        // Predicated region
        $region13: #{tpu_custom_call.1} parent=11 // pred_check
          %p143 = pneg %p60
        $region14: #{tpu_custom_call.1} parent=11 // pred_check_branch
          %145 = sbr.rel (%p143) target = $region16
        $region15: #{tpu_custom_call.1} parent=11 // pred_region
          _
        $region16: #{tpu_custom_call.1} parent=11 // pred_fallthru
          _
        // Predicated region
        $region17: #{tpu_custom_call.1} parent=11 // pred_check
          %p146 = pneg %p81
        $region18: #{tpu_custom_call.1} parent=11 // pred_check_branch
          %148 = sbr.rel (%p146) target = $region20
        $region19: #{tpu_custom_call.1} parent=11 // pred_region
          _
        $region20: #{tpu_custom_call.1} parent=11 // pred_fallthru
          _
        // Predicated region
        $region21: #{tpu_custom_call.1} parent=11 // pred_check
          %p149 = pneg %p102
        $region22: #{tpu_custom_call.1} parent=11 // pred_check_branch
          %151 = sbr.rel (%p149) target = $region24
        $region23: #{tpu_custom_call.1} parent=11 // pred_region
          _
        $region24: #{tpu_custom_call.1} parent=11 // pred_fallthru
          _
      $region12: #{tpu_custom_call.1} parent=5 // pred_fallthru
        _
      %p152 = scmp.lt.s32.totalorder %s13, 4
      // Predicated region
      $region25: #{tpu_custom_call.1} parent=5 // pred_check
        %p153 = pneg %p152
      $region26: #{tpu_custom_call.1} parent=5 // pred_check_branch
        %155 = sbr.rel (%p153) target = $region28
      $region27: #{tpu_custom_call.1} parent=5 // pred_region
        // Predicated region
        $region29: #{tpu_custom_call.1} parent=27 // pred_check
          %p156 = pneg %p33
        $region30: #{tpu_custom_call.1} parent=27 // pred_check_branch
          %158 = sbr.rel (%p156) target = $region32
        $region31: #{tpu_custom_call.1} parent=27 // pred_region
          %s159 = smul.u32 2, %s13
          %p160 = scmp.lt.s32.totalorder %s159, 7
          %s161 = scalar_select %p160, %s159, 7
          %s162 = smul.addr %s161, 8
          %s163 = scalar_lea.vmem %s0, %s162
          %s164 = smul.u32 2, %s13
        $region32: #{tpu_custom_call.1} parent=27 // pred_fallthru
          _
      $region28: #{tpu_custom_call.1} parent=5 // pred_fallthru
        _
      %p165 = scmp.le.s32.totalorder 1, %s13
      %p166 = scmp.lt.s32.totalorder %s13, 5
      %p167 = pnand %p165, %p166
      %p168 = pneg %p167
      // Predicated region
      $region33: #{tpu_custom_call.1} parent=5 // pred_check
        _
      $region34: #{tpu_custom_call.1} parent=5 // pred_check_branch
        %170 = sbr.rel (%p167) target = $region36
      $region35: #{tpu_custom_call.1} parent=5 // pred_region
        %s171 = ssub.s32 %s13, 1
        %s172 = smul.u32 2, %s18
        %p173 = scmp.lt.s32.totalorder %s172, 7
        %s174 = scalar_select %p173, %s172, 7
        %s175 = smul.addr %s174, 8
        %s176 = scalar_lea.vmem %s0, %s175
        %p177 = pneg %p39
        %p178 = pneg %p36
        %p179 = pneg %p60
        %p180 = pneg %p57
        %p181 = pneg %p81
        %p182 = pneg %p78
        %p183 = pneg %p102
        %p184 = pneg %p99
        %p185 = pneg %p128
        %p186 = pneg %p125
        %s187 = sand.u32 %s115, 1
        %s188 = scalar_lea.sflag [#allocation3], %s187
        %s189 = sand.u32 %s115, 1
        %s190 = scalar_lea.vmem [#allocation2], %s189
        %s191 = smul.u32 2, %s18
        %p192 = scmp.lt.s32.totalorder %s191, 7
        %s193 = scalar_select %p192, %s191, 7
        %s194 = smul.addr %s193, 8
        %s195 = scalar_lea.vmem %s0, %s194
        %s196 = smul.u32 2, %s18
        %v197 = vld [vmem:[%s195] sm:$0xff]
        %v198 = vld [vmem:[%s195 + $0x8] sm:$0xff]
        %v199 = vld [vmem:[%s3] sm:$0xff]
        %v200 = vld [vmem:[%s3 + $0x8] sm:$0xff]
        %v201 = vld [vmem:[%s3 + $0x10] sm:$0xff]
        %v202 = vld [vmem:[%s3 + $0x18] sm:$0xff]
        %v203 = vld [vmem:[%s3] sm:$0x1]
        %v204 = vld [vmem:[%s1] sm:$0xff]
        %v205 = vld [vmem:[%s1 + $0x8] sm:$0xff]
        %v206 = vld [vmem:[%s1 + $0x10] sm:$0xff]
        %v207 = vld [vmem:[%s1 + $0x18] sm:$0xff]
        %209 = vset.pattern.permute.xlu0 0
        %210 = vperm.xlu0 %209, %v199
        %v211 = vpop.permute.xlu0 %210
        %214 = vset.pattern.permute.xlu0 0
        %215 = vperm.xlu0 %214, %v200
        %v216 = vpop.permute.xlu0 %215
        %219 = vset.pattern.permute.xlu0 0
        %220 = vperm.xlu0 %219, %v201
        %v221 = vpop.permute.xlu0 %220
        %224 = vset.pattern.permute.xlu0 0
        %225 = vperm.xlu0 %224, %v202
        %v226 = vpop.permute.xlu0 %225
        %vm228 = vcmask 130048
        %v230 = vsel %vm228, %v204, 0
        %v233 = vsel %vm228, %v205, 0
        %v236 = vsel %vm228, %v206, 0
        %v239 = vsel %vm228, %v207, 0
        %v242 = vsel %vm228, %v197, 0
        %v245 = vsel %vm228, %v198, 0
        %247 = vmatpush.xpose.msra.mxu0 0.0
        %248 = vmatpush.xpose.msra.mxu0 0.0
        %249 = vmatpush.xpose.msra.mxu0 0.0
        %250 = vmatpush.xpose.msra.mxu0 0.0
        %251 = vmatpush.xpose.msra.mxu0 0.0
        %252 = vmatpush.xpose.msra.mxu0 0.0
        %253 = vmatpush.xpose.msra.mxu0 0.0
        %254 = vmatpush.xpose.msra.mxu0 0.0
        %255 = vmatpush.xpose.msra.mxu0 0.0
        %256 = vmatpush.xpose.msra.mxu0 0.0
        %257 = vmatpush.xpose.msra.mxu0 0.0
        %258 = vmatpush.xpose.msra.mxu0 0.0
        %259 = vmatpush.xpose.msra.mxu0 0.0
        %260 = vmatpush.xpose.msra.mxu0 0.0
        %261 = vmatpush.xpose.msra.mxu0 %v245
        %262 = vmatpush.xpose.msra.mxu0 %v242
        %263 = vmatmul.f32.gmra.mxu0 %v230
        %v264 = vpop.f32.mrf.mxu0
        %v265 = vadd.f32 %v211, %v264
        %266 = vmatmul.f32.gmra.mxu0 %v233
        %v267 = vpop.f32.mrf.mxu0
        %v268 = vadd.f32 %v216, %v267
        %269 = vmatmul.f32.gmra.mxu0 %v236
        %v270 = vpop.f32.mrf.mxu0
        %v271 = vadd.f32 %v221, %v270
        %272 = vmatmul.f32.gmra.mxu0 %v239
        %v273 = vpop.f32.mrf.mxu0
        %v274 = vadd.f32 %v226, %v273
        %275 = vdwg.mxu0
        %v276 = vtanh.pop %v265
        %v277 = vtanh.pop %v268
        %v278 = vtanh.pop %v271
        %v279 = vtanh.pop %v274
        %v280 = vld [vmem:[%s2] sm:$0xff]
        %v281 = vld [vmem:[%s2 + $0x8] sm:$0xff]
        %v282 = vld [vmem:[%s2 + $0x10] sm:$0xff]
        %v283 = vld [vmem:[%s2 + $0x18] sm:$0xff]
        %284 = vset.pattern.permute.xlu0 1
        %285 = vperm.xlu0 %284, %v199
        %v286 = vpop.permute.xlu0 %285
        %288 = vset.pattern.permute.xlu0 1
        %289 = vperm.xlu0 %288, %v200
        %v290 = vpop.permute.xlu0 %289
        %292 = vset.pattern.permute.xlu0 1
        %293 = vperm.xlu0 %292, %v201
        %v294 = vpop.permute.xlu0 %293
        %296 = vset.pattern.permute.xlu0 1
        %297 = vperm.xlu0 %296, %v202
        %v298 = vpop.permute.xlu0 %297
        %vm300 = vcmask 261120
        %v302 = vsel %vm300, %v280, 0
        %v305 = vsel %vm300, %v281, 0
        %v308 = vsel %vm300, %v282, 0
        %v311 = vsel %vm300, %v283, 0
        %313 = vmatpush.msra.mxu0 0.0
        %314 = vmatpush.msra.mxu0 0.0
        %315 = vmatpush.msra.mxu0 0.0
        %316 = vmatpush.msra.mxu0 0.0
        %317 = vmatpush.msra.mxu0 0.0
        %318 = vmatpush.msra.mxu0 0.0
        %319 = vmatpush.msra.mxu0 0.0
        %320 = vmatpush.msra.mxu0 0.0
        %321 = vmatpush.msra.mxu0 0.0
        %322 = vmatpush.msra.mxu0 0.0
        %323 = vmatpush.msra.mxu0 0.0
        %324 = vmatpush.msra.mxu0 0.0
        %325 = vmatpush.msra.mxu0 %v279
        %326 = vmatpush.msra.mxu0 %v278
        %327 = vmatpush.msra.mxu0 %v277
        %328 = vmatpush.msra.mxu0 %v276
        %329 = vmatmul.f32.gmra.mxu0 %v302
        %v330 = vpop.f32.mrf.mxu0
        %v331 = vadd.f32 %v286, %v330
        %332 = vmatmul.f32.gmra.mxu0 %v305
        %v333 = vpop.f32.mrf.mxu0
        %v334 = vadd.f32 %v290, %v333
        %335 = vmatmul.f32.gmra.mxu0 %v308
        %v336 = vpop.f32.mrf.mxu0
        %v337 = vadd.f32 %v294, %v336
        %338 = vmatmul.f32.gmra.mxu0 %v311
        %v339 = vpop.f32.mrf.mxu0
        %v340 = vadd.f32 %v298, %v339
        %341 = vdwg.mxu0
        %v342 = vtanh.pop %v331
        %v343 = vtanh.pop %v334
        %v344 = vtanh.pop %v337
        %v345 = vtanh.pop %v340
        %346 = vset.pattern.permute.xlu0 2
        %347 = vperm.xlu0 %346, %v199
        %v348 = vpop.permute.xlu0 %347
        %350 = vset.pattern.permute.xlu0 2
        %351 = vperm.xlu0 %350, %v200
        %v352 = vpop.permute.xlu0 %351
        %354 = vset.pattern.permute.xlu0 2
        %355 = vperm.xlu0 %354, %v201
        %v356 = vpop.permute.xlu0 %355
        %358 = vset.pattern.permute.xlu0 2
        %359 = vperm.xlu0 %358, %v202
        %v360 = vpop.permute.xlu0 %359
        %v362 = vmul.f32 %v342, %v348
        %v363 = vmul.f32 %v343, %v352
        %v364 = vmul.f32 %v344, %v356
        %v365 = vmul.f32 %v345, %v360
        %v366 = vsel %vm228, %v362, 0.0
        %v367 = vsel %vm228, %v363, 0.0
        %v368 = vadd.f32 %v366, %v367
        %v369 = vsel %vm228, %v364, 0.0
        %v370 = vadd.f32 %v368, %v369
        %v371 = vsel %vm228, %v365, 0.0
        %v372 = vadd.f32 %v370, %v371
        %v373 = vrot.slane %v372, 4
        %v374 = vadd.f32 %v372, %v373
        %v375 = vrot.slane %v374, 2
        %v376 = vadd.f32 %v374, %v375
        %v377 = vrot.slane %v376, 1
        %v378 = vadd.f32 %v376, %v377
        %380 = vset.pattern.permute.xlu0 3
        %381 = vperm.xlu0 %380, %v203
        %v382 = vpop.permute.xlu0 %381
        %v384 = vadd.f32 %v378, %v382
        %vm385 = vcmask 122880
        %386 = vst.msk [vmem:[%s190] sm:$0x1] %vm385, %v384
        %s387 = sand.u32 %s115, 1
        %s388 = scalar_lea.sflag [#allocation3], %s387
        %s389 = sand.u32 %s115, 1
        %s390 = scalar_lea.vmem [#allocation2], %s389
        // Predicated region
        $region37: #{tpu_custom_call.1} parent=35 // pred_check
          %p391 = pneg %p125
        $region38: #{tpu_custom_call.1} parent=35 // pred_check_branch
          %393 = sbr.rel (%p391) target = $region40
        $region39: #{tpu_custom_call.1} parent=35 // pred_region
          %395 = vsyncadd %s388, 0
          %s396 = scalar_lea.hbm %s4, %s18
          %s398 = sshll.u32 %s390, 4
          %s399 = int_to_ptr.vmem [resolvable:$true] %s398
          %s400 = sshll.u32 %s396, 4
          %s401 = int_to_ptr.hbm [resolvable:$true] %s400
          %403 = dma.vmem_to_hbm [thread:$0]  %s399, 16, %s401, %s388
        $region40: #{tpu_custom_call.1} parent=35 // pred_fallthru
          _
      $region36: #{tpu_custom_call.1} parent=5 // pred_fallthru
        _
      %p404 = scmp.le.s32.totalorder 2, %s13
      // Predicated region
      $region41: #{tpu_custom_call.1} parent=5 // pred_check
        %p405 = pneg %p404
      $region42: #{tpu_custom_call.1} parent=5 // pred_check_branch
        %407 = sbr.rel (%p405) target = $region44
      $region43: #{tpu_custom_call.1} parent=5 // pred_region
        %s408 = ssub.s32 %s13, 2
        // Predicated region
        $region45: #{tpu_custom_call.1} parent=43 // pred_check
          %p409 = pneg %p131
        $region46: #{tpu_custom_call.1} parent=43 // pred_check_branch
          %411 = sbr.rel (%p409) target = $region48
        $region47: #{tpu_custom_call.1} parent=43 // pred_region
          %s412 = sand.u32 %s116, 1
          %s413 = scalar_lea.sflag [#allocation3], %s412
          %s414 = sand.u32 %s116, 1
          %s415 = scalar_lea.vmem [#allocation2], %s414
          %417 = dma.done %s413, 16
        $region48: #{tpu_custom_call.1} parent=43 // pred_fallthru
          _
      $region44: #{tpu_custom_call.1} parent=5 // pred_fallthru
        _
    $region6: #{tpu_custom_call.1} parent=1 // loop_footer
      %s17 = sadd.s32 1, %s13
    $region7: #{tpu_custom_call.1} parent=1 // loop_footer_branch
      %12 = sbr.rel target = $region3
    $region8: #{tpu_custom_call.1} parent=1 // loop_exit
      _
    %418 = vsyncpa [#allocation3], 1
    %s419 = scalar_lea.sflag [#allocation3], 1
    %420 = vsyncpa %s419, 1

</llo_original>
